<compile_context>
chip_gen: v7x
topology: tpu7x:2x2x1
jax: 0.10.0
libtpu: 0.0.40
codegen_flags: <defaults>
</compile_context>

<pallas_src>
import jax
import jax.numpy as jnp
from jax.experimental import pallas as pl
from jax.experimental.pallas import tpu as pltpu


# -----------------------------------------------------------------------------
# Pallas kernel
# -----------------------------------------------------------------------------
def _temporal_attention_kernel(x_ref, w_ref, scal_ref, out_ref):
    """Fused 1x1-conv -> temperature scale -> softmax(time) -> gate.

    x_ref   : (1, C, T) VMEM  one batch element (C on sublanes, T on lanes)
    w_ref   : (C, 1)    VMEM  Conv1d(C, 1, k=1) weight, one scalar per channel
    scal_ref: (2,)      SMEM  [conv bias, 1/temperature]
    out_ref : (1, C, T) VMEM
    """
    x = x_ref[0]                                        # (C, T)
    w = w_ref[...]                                      # (C, 1)
    bias = scal_ref[0]
    inv_temp = scal_ref[1]

    # 1x1 conv over channels == per-timestep weighted sum along the sublane axis.
    logits = (jnp.sum(x * w, axis=0, keepdims=True) + bias) * inv_temp   # (1, T)

    # Numerically stable softmax over the time (lane) axis.
    m = jnp.max(logits, axis=-1, keepdims=True)
    e = jnp.exp(logits - m)
    attn = e / jnp.sum(e, axis=-1, keepdims=True)       # (1, T)

    # Gate the input: broadcast attention weights over channels.
    out_ref[0] = x * attn


# -----------------------------------------------------------------------------
# pallas_call wrapper
# -----------------------------------------------------------------------------
def temporal_attention(x, conv_w, conv_b, temperature):
    """x: (B, C, T); conv_w: (1, C, 1); conv_b: (1,); temperature: (1,) -> (B, C, T)."""
    B, C, T = x.shape
    w = conv_w.reshape(C, 1).astype(jnp.float32)
    scal = jnp.stack([
        conv_b.reshape(()).astype(jnp.float32),
        (1.0 / temperature.reshape(())).astype(jnp.float32),
    ])                                                   # (2,) scalars -> SMEM

    return pl.pallas_call(
        _temporal_attention_kernel,
        out_shape=jax.ShapeDtypeStruct((B, C, T), jnp.float32),
        grid=(B,),
        in_specs=[
            pl.BlockSpec((1, C, T), lambda b: (b, 0, 0)),
            pl.BlockSpec((C, 1), lambda b: (0, 0)),
            pl.BlockSpec(memory_space=pltpu.MemorySpace.SMEM),
        ],
        out_specs=pl.BlockSpec((1, C, T), lambda b: (b, 0, 0)),
        compiler_params=pltpu.CompilerParams(
            dimension_semantics=("parallel",)),          # v7x: split batch over 2 TCs
    )(x.astype(jnp.float32), w, scal)


# -----------------------------------------------------------------------------
# Pure-JAX reference (for correctness check)
# -----------------------------------------------------------------------------
def temporal_attention_ref(x, conv_w, conv_b, temperature):
    logits = jnp.einsum('bct,c->bt', x, conv_w.reshape(-1)) + conv_b[0]   # (B, T)
    logits = logits / temperature[0]
    attn = jax.nn.softmax(logits, axis=-1)
    return x * attn[:, None, :]


# -----------------------------------------------------------------------------
if __name__ == "__main__":
    B, C, T = 2, 4, 16

    key = jax.random.PRNGKey(0)
    kx, kw, kb = jax.random.split(key, 3)
    x = jax.random.normal(kx, (B, C, T), jnp.float32)
    conv_w = jax.random.normal(kw, (1, C, 1), jnp.float32) * 0.5   # Conv1d(C,1,1).weight
    conv_b = jax.random.normal(kb, (1,), jnp.float32) * 0.1        # Conv1d(C,1,1).bias
    temperature = jnp.sqrt(jnp.array([float(C)], jnp.float32))     # Parameter init sqrt(C)

    out = jax.block_until_ready(temporal_attention(x, conv_w, conv_b, temperature))
    ref = jax.block_until_ready(temporal_attention_ref(x, conv_w, conv_b, temperature))

    assert out.shape == (B, C, T), out.shape
    assert jnp.allclose(out, ref, atol=1e-5, rtol=1e-5), (out, ref)

    print("KERNEL_OK")
</pallas_src>

<mosaic_0001>
module attributes {stable_mosaic.version = 11 : i64} {
  func.func @_temporal_attention_kernel(%arg0: i32, %arg1: memref<1x4x16xf32, #tpu.memory_space<vmem>>, %arg2: memref<4x1xf32, #tpu.memory_space<vmem>>, %arg3: memref<2xf32, #tpu.memory_space<smem>>, %arg4: memref<1x4x16xf32, #tpu.memory_space<vmem>>) attributes {dimension_semantics = [#tpu.dimension_semantics<parallel>], iteration_bounds = array<i64: 2>, scalar_prefetch = 0 : i64, scratch_operands = 0 : i64, tpu.core_type = #tpu.core_type<tc>, window_params = [{transform_indices = @transform_0, window_bounds = array<i64: 1, 4, 16>}, {pipeline_mode = #tpu.pipeline_mode<synchronous>, transform_indices = @transform_1, window_bounds = array<i64: 4, 1>}, {transform_indices = @transform_2, window_bounds = array<i64: 2>}, {transform_indices = @transform_3, window_bounds = array<i64: 1, 4, 16>}]} {
    %c0 = arith.constant 0 : index
    %c0_0 = arith.constant 0 : index
    %c0_1 = arith.constant 0 : index
    %0 = vector.load %arg1[%c0, %c0_0, %c0_1] : memref<1x4x16xf32, #tpu.memory_space<vmem>>, vector<1x4x16xf32>
    %1 = vector.shape_cast %0 : vector<1x4x16xf32> to vector<4x16xf32>
    %c0_2 = arith.constant 0 : index
    %c0_3 = arith.constant 0 : index
    %2 = vector.load %arg2[%c0_2, %c0_3] : memref<4x1xf32, #tpu.memory_space<vmem>>, vector<4x1xf32>
    %c0_4 = arith.constant 0 : index
    %3 = memref.load %arg3[%c0_4] : memref<2xf32, #tpu.memory_space<smem>>
    %c1 = arith.constant 1 : index
    %4 = memref.load %arg3[%c1] : memref<2xf32, #tpu.memory_space<smem>>
    %5 = vector.broadcast %2 : vector<4x1xf32> to vector<4x16xf32>
    %6 = arith.mulf %1, %5 : vector<4x16xf32>
    %cst = arith.constant dense<0.000000e+00> : vector<16xf32>
    %7 = vector.multi_reduction <add>, %6, %cst [0] : vector<4x16xf32> to vector<16xf32>
    %8 = vector.shape_cast %7 : vector<16xf32> to vector<1x16xf32>
    %9 = vector.broadcast %3 : f32 to vector<1x16xf32>
    %10 = arith.addf %8, %9 : vector<1x16xf32>
    %11 = vector.broadcast %4 : f32 to vector<1x16xf32>
    %12 = arith.mulf %10, %11 : vector<1x16xf32>
    %cst_5 = arith.constant dense<0xFF800000> : vector<1xf32>
    %13 = vector.multi_reduction <maximumf>, %12, %cst_5 [1] : vector<1x16xf32> to vector<1xf32>
    %14 = vector.shape_cast %13 : vector<1xf32> to vector<1x1xf32>
    %15 = vector.broadcast %14 : vector<1x1xf32> to vector<1x16xf32>
    %16 = arith.subf %12, %15 : vector<1x16xf32>
    %17 = math.exp %16 : vector<1x16xf32>
    %cst_6 = arith.constant dense<0.000000e+00> : vector<1xf32>
    %18 = vector.multi_reduction <add>, %17, %cst_6 [1] : vector<1x16xf32> to vector<1xf32>
    %19 = vector.shape_cast %18 : vector<1xf32> to vector<1x1xf32>
    %20 = vector.broadcast %19 : vector<1x1xf32> to vector<1x16xf32>
    %21 = arith.divf %17, %20 : vector<1x16xf32>
    %22 = vector.broadcast %21 : vector<1x16xf32> to vector<4x16xf32>
    %23 = arith.mulf %1, %22 : vector<4x16xf32>
    %c0_7 = arith.constant 0 : index
    %c0_8 = arith.constant 0 : index
    %c0_9 = arith.constant 0 : index
    %24 = vector.load %arg4[%c0_7, %c0_8, %c0_9] : memref<1x4x16xf32, #tpu.memory_space<vmem>>, vector<1x4x16xf32>
    %25 = vector.shape_cast %24 : vector<1x4x16xf32> to vector<4x16xf32>
    %26 = vector.shape_cast %23 : vector<4x16xf32> to vector<1x4x16xf32>
    tpu.vector_store %arg4[%c0_7, %c0_8, %c0_9], %26 {strides = array<i32>} : memref<1x4x16xf32, #tpu.memory_space<vmem>>, vector<1x4x16xf32>,
    return
  }
  func.func @transform_0(%arg0: i32) -> (i32, i32, i32) {
    %c0_i32 = arith.constant 0 : i32
    %c0_i32_0 = arith.constant 0 : i32
    %c0_i32_1 = arith.constant 0 : i32
    return %arg0, %c0_i32, %c0_i32_0 : i32, i32, i32
  }
  func.func @transform_1(%arg0: i32) -> (i32, i32) {
    %c0_i32 = arith.constant 0 : i32
    %c0_i32_0 = arith.constant 0 : i32
    %c0_i32_1 = arith.constant 0 : i32
    return %c0_i32, %c0_i32_0 : i32, i32
  }
  func.func @transform_2(%arg0: i32) -> i32 {
    %c0_i32 = arith.constant 0 : i32
    %c0_i32_0 = arith.constant 0 : i32
    return %c0_i32 : i32
  }
  func.func @transform_3(%arg0: i32) -> (i32, i32, i32) {
    %c0_i32 = arith.constant 0 : i32
    %c0_i32_0 = arith.constant 0 : i32
    %c0_i32_1 = arith.constant 0 : i32
    return %arg0, %c0_i32, %c0_i32_0 : i32, i32, i32
  }
}

</mosaic_0001>

<llo_original>
// kernel: tpu_custom_call.1
$region0: #{tpu_custom_call.1}
  #allocation0 [shape = 'u32[]', space=smem, size = 0x4, offset = 0x4, fixed_abs, tag = 'smem constant byte address 0x4 - core index']
  #allocation1 [shape = 'u32[144,128]{1,0:T(1,128)}', space=vmem, size = 0x12000, scoped, tag = 'internal scratch']
  %s0 = inlined_call_operand.hbm [shape: f32[2,4,16], index: 0, kind: input, shape index: {}]
  %s1 = inlined_call_operand.vmem [shape: f32[4,1], index: 1, kind: input, shape index: {}]
  %s2 = inlined_call_operand.vmem [shape: f32[2], index: 2, kind: input, shape index: {}]
  %s3 = inlined_call_operand.hbm [shape: f32[2,4,16], index: 3, kind: output, shape index: {}]
  %s4 = sld [smem:[#allocation0]]
  $region53: #{tpu_custom_call.1} parent=0
    _
  %s6 = ssub.s32 1, %s4
  %s7 = scalar_select 0, %s6, %s4
  $region1: #{tpu_custom_call.1} parent=0
    #allocation2 [shape = 'u8[4096]{0}', space=vmem, size = 0x1000, scoped, tag = 'input window, operand 0']
    #allocation3 [shape = 's32[2]{0}', space=sflag, size = 0x8, scoped, tag = 'scoped memory for tpu_custom_call.1']
    #allocation4 [shape = 's32[2]{0}', space=sflag, size = 0x8, scoped, tag = 'scoped memory for tpu_custom_call.1']
    #allocation5 [shape = 's32[2]{0}', space=sflag, size = 0x8, scoped, tag = 'scoped memory for tpu_custom_call.1']
    #allocation6 [shape = 'u8[512]{0}', space=smem, size = 0x200, scoped, tag = 'input window, operand 2, single buffered']
    #allocation7 [shape = 'u8[4096]{0}', space=vmem, size = 0x1000, scoped, tag = 'output window, operand 0']
    %8 = vsyncpa [#allocation3], 0
    %s9 = scalar_lea.sflag [#allocation3], 1
    %10 = vsyncpa %s9, 0
    %11 = vsyncpa [#allocation5], 0
    %12 = vsyncpa [#allocation4], 0
    %s13 = scalar_lea.sflag [#allocation4], 1
    %14 = vsyncpa %s13, 0
    loop: start=0, step=1, limit=4
    $region2: #{tpu_custom_call.1} parent=1 // loop_pre_header
      _
    $region3: #{tpu_custom_call.1} parent=1 // loop_header
      %s16 = sphi 0, %s20
      %p17 = scmp.ge.s32.totalorder %s16, 4
      %s26 = sphi 0, %s28
      %s29 = sphi 0, %s26
      %s30 = sphi 0, %s29
      %s46 = sphi 0, %s30
      %s50 = sphi 0, %s50
      %s52 = sphi 0, %s50
      %s53 = sphi 0, %s52
      %s67 = sphi 0, %s53
      %s71 = sphi 0, %s71
      %s73 = sphi 0, %s71
      %s74 = sphi 0, %s73
      %s88 = sphi 0, %s74
      %s94 = sphi 0, %s96
      %s97 = sphi 0, %s94
      %s98 = sphi 0, %s97
      %s114 = sphi 0, %s98
    $region4: #{tpu_custom_call.1} parent=1 // loop_header_branch
      %19 = sbr.rel (%p17) target = $region8
    $region5: #{tpu_custom_call.1} parent=1 // loop_body
      %s21 = ssub.s32 %s16, 1
      %s22 = ssub.s32 %s16, 2
      %s23 = sadd.s32 %s16, 1
      %s24 = ssub.s32 %s16, %s23
      %p25 = scmp.eq.s32.totalorder %s24, 0
      %s27 = sadd.s32 %s26, 1
      %s28 = scalar_select %p25, %s26, %s27
      %p31 = pneg %p25
      %p32 = scmp.eq.s32.totalorder %s16, 1
      %p33 = por %p31, %p32
      %p34 = scmp.ne.s32.totalorder %s26, %s29
      %p35 = scmp.eq.s32.totalorder %s16, 0
      %p36 = por %p34, %p35
      %p37 = scmp.ne.s32.totalorder %s26, %s29
      %p38 = scmp.eq.s32.totalorder %s21, 1
      %p39 = por %p37, %p38
      %p40 = scmp.ne.s32.totalorder %s29, %s30
      %p41 = scmp.eq.s32.totalorder %s21, 0
      %p42 = por %p40, %p41
      %p43 = scmp.ne.s32.totalorder %s29, %s30
      %p44 = scmp.eq.s32.totalorder %s22, 1
      %p45 = por %p43, %p44
      %p47 = scmp.ne.s32.totalorder %s30, %s46
      %p48 = scmp.eq.s32.totalorder %s22, 0
      %p49 = por %p47, %p48
      %s51 = sadd.s32 %s50, 1
      %p54 = scmp.eq.s32.totalorder %s16, 1
      %p55 = scmp.ne.s32.totalorder %s50, %s52
      %p56 = scmp.eq.s32.totalorder %s16, 0
      %p57 = por %p55, %p56
      %p58 = scmp.ne.s32.totalorder %s50, %s52
      %p59 = scmp.eq.s32.totalorder %s21, 1
      %p60 = por %p58, %p59
      %p61 = scmp.ne.s32.totalorder %s52, %s53
      %p62 = scmp.eq.s32.totalorder %s21, 0
      %p63 = por %p61, %p62
      %p64 = scmp.ne.s32.totalorder %s52, %s53
      %p65 = scmp.eq.s32.totalorder %s22, 1
      %p66 = por %p64, %p65
      %p68 = scmp.ne.s32.totalorder %s53, %s67
      %p69 = scmp.eq.s32.totalorder %s22, 0
      %p70 = por %p68, %p69
      %s72 = sadd.s32 %s71, 1
      %p75 = scmp.eq.s32.totalorder %s16, 1
      %p76 = scmp.ne.s32.totalorder %s71, %s73
      %p77 = scmp.eq.s32.totalorder %s16, 0
      %p78 = por %p76, %p77
      %p79 = scmp.ne.s32.totalorder %s71, %s73
      %p80 = scmp.eq.s32.totalorder %s21, 1
      %p81 = por %p79, %p80
      %p82 = scmp.ne.s32.totalorder %s73, %s74
      %p83 = scmp.eq.s32.totalorder %s21, 0
      %p84 = por %p82, %p83
      %p85 = scmp.ne.s32.totalorder %s73, %s74
      %p86 = scmp.eq.s32.totalorder %s22, 1
      %p87 = por %p85, %p86
      %p89 = scmp.ne.s32.totalorder %s74, %s88
      %p90 = scmp.eq.s32.totalorder %s22, 0
      %p91 = por %p89, %p90
      %s92 = ssub.s32 %s16, %s23
      %p93 = scmp.eq.s32.totalorder %s92, 0
      %s95 = sadd.s32 %s94, 1
      %s96 = scalar_select %p93, %s94, %s95
      %p99 = pneg %p93
      %p100 = scmp.eq.s32.totalorder %s16, 1
      %p101 = por %p99, %p100
      %p102 = scmp.ne.s32.totalorder %s94, %s97
      %p103 = scmp.eq.s32.totalorder %s16, 0
      %p104 = por %p102, %p103
      %p105 = scmp.ne.s32.totalorder %s94, %s97
      %p106 = scmp.eq.s32.totalorder %s21, 1
      %p107 = por %p105, %p106
      %p108 = scmp.ne.s32.totalorder %s97, %s98
      %p109 = scmp.eq.s32.totalorder %s21, 0
      %p110 = por %p108, %p109
      %p111 = scmp.ne.s32.totalorder %s97, %s98
      %p112 = scmp.eq.s32.totalorder %s22, 1
      %p113 = por %p111, %p112
      %p115 = scmp.ne.s32.totalorder %s98, %s114
      %p116 = scmp.eq.s32.totalorder %s22, 0
      %p117 = por %p115, %p116
      %p118 = scmp.le.s32.totalorder 1, %s16
      %p119 = scmp.lt.s32.totalorder %s16, 3
      %p120 = pnand %p118, %p119
      %p121 = pneg %p120
      // Predicated region
      $region9: #{tpu_custom_call.1} parent=5 // pred_check
        _
      $region10: #{tpu_custom_call.1} parent=5 // pred_check_branch
        %123 = sbr.rel (%p120) target = $region12
      $region11: #{tpu_custom_call.1} parent=5 // pred_region
        %s124 = ssub.s32 %s16, 1
        // Predicated region
        $region13: #{tpu_custom_call.1} parent=11 // pred_check
          %p125 = pneg %p63
        $region14: #{tpu_custom_call.1} parent=11 // pred_check_branch
          %127 = sbr.rel (%p125) target = $region16
        $region15: #{tpu_custom_call.1} parent=11 // pred_region
          _
        $region16: #{tpu_custom_call.1} parent=11 // pred_fallthru
          _
        // Predicated region
        $region17: #{tpu_custom_call.1} parent=11 // pred_check
          %p128 = pneg %p84
        $region18: #{tpu_custom_call.1} parent=11 // pred_check_branch
          %130 = sbr.rel (%p128) target = $region20
        $region19: #{tpu_custom_call.1} parent=11 // pred_region
          %s132 = ssub.s32 16, 16
          %133 = vsyncadd [#allocation5], %s132
          %s135 = sshll.u32 %s2, 4
          %s136 = int_to_ptr.vmem [resolvable:$true] %s135
          %138 = dma.vmem_to_smem %s136, 16, [#allocation6], [#allocation5]
        $region20: #{tpu_custom_call.1} parent=11 // pred_fallthru
          _
      $region12: #{tpu_custom_call.1} parent=5 // pred_fallthru
        _
      %p139 = scmp.lt.s32.totalorder %s16, 2
      // Predicated region
      $region21: #{tpu_custom_call.1} parent=5 // pred_check
        %p140 = pneg %p139
      $region22: #{tpu_custom_call.1} parent=5 // pred_check_branch
        %142 = sbr.rel (%p140) target = $region24
      $region23: #{tpu_custom_call.1} parent=5 // pred_region
        // Predicated region
        $region25: #{tpu_custom_call.1} parent=23 // pred_check
          %p143 = pneg %p36
        $region26: #{tpu_custom_call.1} parent=23 // pred_check_branch
          %145 = sbr.rel (%p143) target = $region28
        $region27: #{tpu_custom_call.1} parent=23 // pred_region
          %s146 = sand.u32 %s26, 1
          %s147 = scalar_lea.sflag [#allocation3], %s146
          %s148 = sand.u32 %s26, 1
          %s149 = smul.addr %s148, 4
          %s150 = scalar_lea.vmem [#allocation2], %s149
          %s152 = ssub.s32 64, 64
          %153 = vsyncadd %s147, %s152
          %s154 = smul.addr %s16, 64
          %s155 = scalar_lea.hbm %s0, %s154
          %s157 = sshll.u32 %s150, 4
          %s158 = int_to_ptr.vmem [resolvable:$true] %s157
          %160 = dma.hbm_to_vmem [thread:$0]  %s155, 64, %s158, %s147
        $region28: #{tpu_custom_call.1} parent=23 // pred_fallthru
          _
      $region24: #{tpu_custom_call.1} parent=5 // pred_fallthru
        _
      %p161 = scmp.le.s32.totalorder 1, %s16
      %p162 = scmp.lt.s32.totalorder %s16, 3
      %p163 = pnand %p161, %p162
      %p164 = pneg %p163
      // Predicated region
      $region29: #{tpu_custom_call.1} parent=5 // pred_check
        _
      $region30: #{tpu_custom_call.1} parent=5 // pred_check_branch
        %166 = sbr.rel (%p163) target = $region32
      $region31: #{tpu_custom_call.1} parent=5 // pred_region
        %s167 = ssub.s32 %s16, 1
        %s168 = sand.u32 %s29, 1
        %s169 = scalar_lea.sflag [#allocation3], %s168
        %s170 = sand.u32 %s29, 1
        %s171 = smul.addr %s170, 4
        %s172 = scalar_lea.vmem [#allocation2], %s171
        // Predicated region
        $region33: #{tpu_custom_call.1} parent=31 // pred_check
          %p173 = pneg %p42
        $region34: #{tpu_custom_call.1} parent=31 // pred_check_branch
          %175 = sbr.rel (%p173) target = $region36
        $region35: #{tpu_custom_call.1} parent=31 // pred_region
          %176 = dma.done %s169, 64
        $region36: #{tpu_custom_call.1} parent=31 // pred_fallthru
          _
        // Predicated region
        $region37: #{tpu_custom_call.1} parent=31 // pred_check
          %p177 = pneg %p84
        $region38: #{tpu_custom_call.1} parent=31 // pred_check_branch
          %179 = sbr.rel (%p177) target = $region40
        $region39: #{tpu_custom_call.1} parent=31 // pred_region
          %180 = dma.done [#allocation5], 16
        $region40: #{tpu_custom_call.1} parent=31 // pred_fallthru
          _
        %181 = sfence
        %s182 = sand.u32 %s29, 1
        %s183 = scalar_lea.sflag [#allocation3], %s182
        %s184 = sand.u32 %s29, 1
        %s185 = smul.addr %s184, 4
        %s186 = scalar_lea.vmem [#allocation2], %s185
        %p187 = pneg %p42
        %p188 = pneg %p39
        %p189 = pneg %p63
        %p190 = pneg %p60
        %p191 = pneg %p84
        %p192 = pneg %p81
        %p193 = pneg %p110
        %p194 = pneg %p107
        %s195 = sand.u32 %s97, 1
        %s196 = scalar_lea.sflag [#allocation4], %s195
        %s197 = sand.u32 %s97, 1
        %s198 = smul.addr %s197, 4
        %s199 = scalar_lea.vmem [#allocation7], %s198
        %v200 = vld [vmem:[%s172] sm:$0xf]
        %v201 = vld [vmem:[%s1] sm:$0xf]
        %s202 = sld [smem:[#allocation6]]
        %s203 = sld [smem:[#allocation6 + $0x1]]
        %205 = vset.pattern.permute.xlu0 0
        %206 = vperm.xlu0 %205, %v201
        %v207 = vpop.permute.xlu0 %206
        %v209 = vmul.f32 %v200, %v207
        %vm210 = vcmask 125952
        %v211 = vsel %vm210, %v209, 0.0
        %v212 = vrot.slane %v211, 4
        %v213 = vadd.f32 %v211, %v212
        %v214 = vrot.slane %v213, 2
        %v215 = vadd.f32 %v213, %v214
        %v216 = vrot.slane %v215, 1
        %v217 = vadd.f32 %v215, %v216
        %v218 = vstv %s202
        %v219 = vadd.f32 %v217, %v218
        %v220 = vstv %s203
        %v221 = vmul.f32 %v219, %v220
        %vm222 = vcmask 130048
        %v223 = vsel %vm222, %v221, -inf
        %224 = vmax.xlane.f32.xlu0 %v223
        %v225 = vpop.xlane.xlu0 %224
        %v226 = vsub.f32 %v221, %v225
        %v227 = vmul.f32 %v226, 1.442695
        %v228 = vpow.pop %v227
        %v229 = vsel %vm222, %v228, 0.0
        %230 = vadd.xlane.f32.xlu0 %v229
        %v231 = vpop.xlane.xlu0 %230
        %v232 = vrcp.pop %v231
        %v233 = vmul.f32 %v228, %v232
        %v234 = vmul.f32 %v200, %v233
        %235 = vst.msk [vmem:[%s199] sm:$0xf] %vm210, %v234
        %s236 = sand.u32 %s97, 1
        %s237 = scalar_lea.sflag [#allocation4], %s236
        %s238 = sand.u32 %s97, 1
        %s239 = smul.addr %s238, 4
        %s240 = scalar_lea.vmem [#allocation7], %s239
        // Predicated region
        $region41: #{tpu_custom_call.1} parent=31 // pred_check
          %p241 = pneg %p107
        $region42: #{tpu_custom_call.1} parent=31 // pred_check_branch
          %243 = sbr.rel (%p241) target = $region44
        $region43: #{tpu_custom_call.1} parent=31 // pred_region
          %s245 = ssub.s32 64, 64
          %246 = vsyncadd %s237, %s245
          %s247 = smul.addr %s21, 64
          %s248 = scalar_lea.hbm %s3, %s247
          %s250 = sshll.u32 %s240, 4
          %s251 = int_to_ptr.vmem [resolvable:$true] %s250
          %253 = dma.vmem_to_hbm [thread:$0]  %s251, 64, %s248, %s237
        $region44: #{tpu_custom_call.1} parent=31 // pred_fallthru
          _
      $region32: #{tpu_custom_call.1} parent=5 // pred_fallthru
        _
      %p254 = scmp.le.s32.totalorder 2, %s16
      // Predicated region
      $region45: #{tpu_custom_call.1} parent=5 // pred_check
        %p255 = pneg %p254
      $region46: #{tpu_custom_call.1} parent=5 // pred_check_branch
        %257 = sbr.rel (%p255) target = $region48
      $region47: #{tpu_custom_call.1} parent=5 // pred_region
        %s258 = ssub.s32 %s16, 2
        // Predicated region
        $region49: #{tpu_custom_call.1} parent=47 // pred_check
          %p259 = pneg %p113
        $region50: #{tpu_custom_call.1} parent=47 // pred_check_branch
          %261 = sbr.rel (%p259) target = $region52
        $region51: #{tpu_custom_call.1} parent=47 // pred_region
          %s262 = sand.u32 %s98, 1
          %s263 = scalar_lea.sflag [#allocation4], %s262
          %s264 = sand.u32 %s98, 1
          %s265 = smul.addr %s264, 4
          %s266 = scalar_lea.vmem [#allocation7], %s265
          %267 = dma.done %s263, 64
        $region52: #{tpu_custom_call.1} parent=47 // pred_fallthru
          _
      $region48: #{tpu_custom_call.1} parent=5 // pred_fallthru
        _
    $region6: #{tpu_custom_call.1} parent=1 // loop_footer
      %s20 = sadd.s32 1, %s16
    $region7: #{tpu_custom_call.1} parent=1 // loop_footer_branch
      %15 = sbr.rel target = $region3
    $region8: #{tpu_custom_call.1} parent=1 // loop_exit
      _
    %268 = vsyncpa [#allocation3], 1
    %s269 = scalar_lea.sflag [#allocation3], 1
    %270 = vsyncpa %s269, 1
    %271 = vsyncpa [#allocation4], 1
    %s272 = scalar_lea.sflag [#allocation4], 1
    %273 = vsyncpa %s272, 1
    %274 = vsyncpa [#allocation5], 1
    %s275 = scalar_lea.sflag [#allocation5], 1
    %276 = vsyncpa %s275, 1

</llo_original>
